<compile_context>
chip_gen: v5e
topology: v5e:2x2
jax: 0.10.0
libtpu: 0.0.40
codegen_flags: <defaults>
</compile_context>

<pallas_src>
import jax
import jax.numpy as jnp
from jax.experimental import pallas as pl
from jax.experimental.pallas import tpu as pltpu

REPARAM_NOISE = 1e-6


def _round_up(x, m):
    return ((x + m - 1) // m) * m


def make_actor_kernel(fc1, fc2, head_w):
    half = head_w // 2

    def actor_kernel(x_ref, w1_ref, w2_ref, wh_ref, b_ref, out_ref):
        # Concatenated bias buffer: [b1 | b2 | b_head]  (f32, lane-aligned slices)
        b1 = b_ref[:, 0:fc1]
        b2 = b_ref[:, fc1:fc1 + fc2]
        bh = b_ref[:, fc1 + fc2:fc1 + fc2 + head_w]

        # bf16 operands into the MXU, f32 accumulation, f32 VPU epilogue
        # (f32 epilogue is required on v5e, harmless elsewhere).
        x = x_ref[...].astype(jnp.bfloat16)
        h1 = jnp.dot(x, w1_ref[...], preferred_element_type=jnp.float32) + b1
        h1 = jnp.maximum(h1, 0.0)

        h2 = jnp.dot(h1.astype(jnp.bfloat16), w2_ref[...],
                     preferred_element_type=jnp.float32) + b2
        h2 = jnp.maximum(h2, 0.0)

        # Single fused head matmul: lanes [0, half) = mu, [half, head_w) = sigma.
        head = jnp.dot(h2.astype(jnp.bfloat16), wh_ref[...],
                       preferred_element_type=jnp.float32) + bh

        # Clamp only the sigma lanes via a lane-index mask in f32; the final
        # downcast (e.g. to bf16) rounds clamped values to at worst
        # [bf16(1e-6), 1.0], so no post-cast re-clamp is required.
        col = jax.lax.broadcasted_iota(jnp.int32, head.shape, 1)
        clamped = jnp.clip(head, REPARAM_NOISE, 1.0)
        out = jnp.where(col >= half, clamped, head)

        out_ref[...] = out.astype(out_ref.dtype)

    return actor_kernel


def pack_params(params, n_actions):
    """Convert logical f32 params into kernel-ready packed params."""
    fc1 = params["w1"].shape[1]
    fc2 = params["w2"].shape[1]
    half = max(64, ((n_actions + 63) // 64) * 64)   # per-head lane padding
    head_w = 2 * half                               # multiple of 128

    def pad_cols(a, width):
        return jnp.pad(a, ((0, 0), (0, width - a.shape[1])))

    w_head = jnp.concatenate(
        [pad_cols(params["wmu"], half), pad_cols(params["wsig"], half)], axis=1)
    b_head = jnp.concatenate(
        [pad_cols(params["bmu"], half), pad_cols(params["bsig"], half)], axis=1)
    b_all = jnp.concatenate(
        [params["b1"], params["b2"], b_head], axis=1).astype(jnp.float32)

    return {
        "w1": params["w1"].astype(jnp.bfloat16),
        "w2": params["w2"].astype(jnp.bfloat16),
        "wh": w_head.astype(jnp.bfloat16),
        "b_all": b_all,
        "half": half,
        "fc1": fc1,
        "fc2": fc2,
    }


def _choose_tiling(B, tb):
    """Pick (padded batch Bp, batch tile TB) for the 1-D grid.

    - Default tile is large (tb=512) so the kernel is not per-grid-step
      overhead bound (128-wide tiles reach only ~29% of HBM roofline).
    - For large batches we guarantee >= 2 tiles so the 'parallel' batch axis
      shards across v7x's two TensorCores (no effect on v5e/v6e).
    - Multi-tile TB is a multiple of 16 so the bf16 output tile stays
      (16,128)-aligned; a single tile always equals the full (padded) array.
    """
    Bp = _round_up(B, 8)
    n_tiles = (Bp + tb - 1) // tb
    if n_tiles == 1 and Bp >= 512:
        n_tiles = 2
    if n_tiles == 1:
        return Bp, Bp
    TB = _round_up((Bp + n_tiles - 1) // n_tiles, 16)
    Bp = _round_up(Bp, TB)
    return Bp, TB


def actor_forward(state, packed, n_actions, *, tb=512, out_dtype=jnp.bfloat16):
    """state: [B, input_dims] (f32 or bf16). packed: output of pack_params."""
    B, in_dims = state.shape
    fc1, fc2 = packed["fc1"], packed["fc2"]
    half = packed["half"]
    head_w = 2 * half
    bias_w = packed["b_all"].shape[1]

    Bp, TB = _choose_tiling(B, tb)

    # Keep state at its native width/dtype (f32 or bf16) -- no lane padding.
    x = state
    if x.dtype not in (jnp.float32, jnp.bfloat16):
        x = x.astype(jnp.float32)
    if Bp != B:
        x = jnp.pad(x, ((0, Bp - B), (0, 0)))

    kernel = make_actor_kernel(fc1, fc2, head_w)

    flops = 2 * Bp * (in_dims * fc1 + fc1 * fc2 + fc2 * head_w)
    bytes_accessed = (x.size * x.dtype.itemsize
                      + packed["w1"].size * 2 + packed["w2"].size * 2
                      + packed["wh"].size * 2 + packed["b_all"].size * 4
                      + Bp * head_w * jnp.dtype(out_dtype).itemsize)

    out = pl.pallas_call(
        kernel,
        out_shape=jax.ShapeDtypeStruct((Bp, head_w), out_dtype),
        grid_spec=pltpu.PrefetchScalarGridSpec(
            num_scalar_prefetch=0,
            grid=(Bp // TB,),
            in_specs=[
                pl.BlockSpec((TB, in_dims), lambda i: (i, 0)),   # state tile
                pl.BlockSpec((in_dims, fc1), lambda i: (0, 0)),  # W1 (resident)
                pl.BlockSpec((fc1, fc2), lambda i: (0, 0)),      # W2 (resident)
                pl.BlockSpec((fc2, head_w), lambda i: (0, 0)),   # fused head W
                pl.BlockSpec((1, bias_w), lambda i: (0, 0)),     # all biases
            ],
            out_specs=pl.BlockSpec((TB, head_w), lambda i: (i, 0)),
        ),
        compiler_params=pltpu.CompilerParams(
            dimension_semantics=("parallel",)),
        cost_estimate=pl.CostEstimate(
            flops=flops, transcendentals=0, bytes_accessed=bytes_accessed),
    )(x, packed["w1"], packed["w2"], packed["wh"], packed["b_all"])

    # Extraction of mu/sigma. Ideally the consumer reads the packed [B, 128]
    # bf16 tile directly (avoids a second HBM pass over `out`); we slice and
    # upcast the tiny [B, n_actions] results here for module-API parity.
    mu = out[:B, :n_actions].astype(jnp.float32)
    sigma = out[:B, half:half + n_actions].astype(jnp.float32)
    return mu, sigma


def init_params(key, input_dims, fc1_dims, fc2_dims, n_actions):
    """Deterministic synthetic init (mirrors weights_init_normal: small normals)."""
    ks = jax.random.split(key, 8)
    std = 0.1

    def w(k, shape):
        return std * jax.random.normal(k, shape, dtype=jnp.float32)

    # Weights stored as [in, out] (transposed vs. PyTorch's [out, in]).
    return {
        "w1":   w(ks[0], (input_dims, fc1_dims)),
        "b1":   w(ks[1], (1, fc1_dims)),
        "w2":   w(ks[2], (fc1_dims, fc2_dims)),
        "b2":   w(ks[3], (1, fc2_dims)),
        "wmu":  w(ks[4], (fc2_dims, n_actions)),
        "bmu":  w(ks[5], (1, n_actions)),
        "wsig": w(ks[6], (fc2_dims, n_actions)),
        "bsig": w(ks[7], (1, n_actions)),
    }


def actor_forward_ref(state, params):
    """Pure-JAX reference mirroring the kernel's precision (bf16 MXU, f32 acc,
    f32 epilogue). Output stays f32; the kernel's bf16 output cast is covered
    by the comparison tolerance."""
    def mm(x, w):
        return jnp.dot(x.astype(jnp.bfloat16), w.astype(jnp.bfloat16),
                       preferred_element_type=jnp.float32)

    h1 = jnp.maximum(mm(state, params["w1"]) + params["b1"], 0.0)
    h2 = jnp.maximum(mm(h1, params["w2"]) + params["b2"], 0.0)
    mu = mm(h2, params["wmu"]) + params["bmu"]
    sigma = jnp.clip(mm(h2, params["wsig"]) + params["bsig"], REPARAM_NOISE, 1.0)
    return mu, sigma


if __name__ == "__main__":
    key = jax.random.PRNGKey(0)
    k_params, k_state, k_big = jax.random.split(key, 3)

    # Shapes consistent with the module: input_dims=32, fc1=fc2=256, n_actions=8.
    B, INPUT_DIMS, FC1, FC2, N_ACTIONS = 8, 32, 256, 256, 8

    params = init_params(k_params, INPUT_DIMS, FC1, FC2, N_ACTIONS)
    packed = pack_params(params, N_ACTIONS)

    # bf16 output floor: float32(1e-6) rounds down to this after the cast.
    bf16_noise = float(jnp.asarray(REPARAM_NOISE, dtype=jnp.bfloat16))

    # --- small per-env-step batch (single tile) ---
    state = jax.random.normal(k_state, (B, INPUT_DIMS), dtype=jnp.float32)
    mu, sigma = actor_forward(state, packed, N_ACTIONS)
    jax.block_until_ready((mu, sigma))

    mu_ref, sigma_ref = actor_forward_ref(state, params)
    assert mu.shape == (B, N_ACTIONS) and sigma.shape == (B, N_ACTIONS)
    assert jnp.allclose(mu, mu_ref, atol=2e-2, rtol=2e-2)
    assert jnp.allclose(sigma, sigma_ref, atol=2e-2, rtol=2e-2)
    assert float(sigma.min()) >= bf16_noise - 1e-9
    assert float(sigma.max()) <= 1.0

    # --- rollout-sized batch (multi-tile grid; >= 2 tiles => both v7x TCs) ---
    BIG = 1024
    big_state = jax.random.normal(k_big, (BIG, INPUT_DIMS), dtype=jnp.float32)
    mu_b, sigma_b = actor_forward(big_state, packed, N_ACTIONS)
    jax.block_until_ready((mu_b, sigma_b))

    mu_bref, sigma_bref = actor_forward_ref(big_state, params)
    assert mu_b.shape == (BIG, N_ACTIONS) and sigma_b.shape == (BIG, N_ACTIONS)
    assert jnp.allclose(mu_b, mu_bref, atol=2e-2, rtol=2e-2)
    assert jnp.allclose(sigma_b, sigma_bref, atol=2e-2, rtol=2e-2)
    assert float(sigma_b.min()) >= bf16_noise - 1e-9
    assert float(sigma_b.max()) <= 1.0

    print("KERNEL_OK")
</pallas_src>

<mosaic_0001>
module attributes {stable_mosaic.version = 11 : i64} {
  func.func @actor_kernel(%arg0: i32, %arg1: memref<8x32xf32, #tpu.memory_space<vmem>>, %arg2: memref<32x256xbf16, #tpu.memory_space<vmem>>, %arg3: memref<256x256xbf16, #tpu.memory_space<vmem>>, %arg4: memref<256x128xbf16, #tpu.memory_space<vmem>>, %arg5: memref<1x640xf32, #tpu.memory_space<vmem>>, %arg6: memref<8x128xbf16, #tpu.memory_space<vmem>>) attributes {dimension_semantics = [#tpu.dimension_semantics<parallel>], iteration_bounds = array<i64: 1>, scalar_prefetch = 0 : i64, scratch_operands = 0 : i64, tpu.core_type = #tpu.core_type<tc>, window_params = [{transform_indices = @transform_0, window_bounds = array<i64: 8, 32>}, {pipeline_mode = #tpu.pipeline_mode<synchronous>, transform_indices = @transform_1, window_bounds = array<i64: 32, 256>}, {pipeline_mode = #tpu.pipeline_mode<synchronous>, transform_indices = @transform_2, window_bounds = array<i64: 256, 256>}, {pipeline_mode = #tpu.pipeline_mode<synchronous>, transform_indices = @transform_3, window_bounds = array<i64: 256, 128>}, {pipeline_mode = #tpu.pipeline_mode<synchronous>, transform_indices = @transform_4, window_bounds = array<i64: 1, 640>}, {transform_indices = @transform_5, window_bounds = array<i64: 8, 128>}]} {
    %c0 = arith.constant 0 : index
    %c0_0 = arith.constant 0 : index
    %0 = vector.load %arg5[%c0, %c0_0] : memref<1x640xf32, #tpu.memory_space<vmem>>, vector<1x256xf32>
    %c0_1 = arith.constant 0 : index
    %c256 = arith.constant 256 : index
    %1 = vector.load %arg5[%c0_1, %c256] : memref<1x640xf32, #tpu.memory_space<vmem>>, vector<1x256xf32>
    %c0_2 = arith.constant 0 : index
    %c512 = arith.constant 512 : index
    %2 = vector.load %arg5[%c0_2, %c512] : memref<1x640xf32, #tpu.memory_space<vmem>>, vector<1x128xf32>
    %c0_3 = arith.constant 0 : index
    %c0_4 = arith.constant 0 : index
    %3 = vector.load %arg1[%c0_3, %c0_4] : memref<8x32xf32, #tpu.memory_space<vmem>>, vector<8x32xf32>
    %4 = arith.truncf %3 : vector<8x32xf32> to vector<8x32xbf16>
    %c0_5 = arith.constant 0 : index
    %c0_6 = arith.constant 0 : index
    %5 = vector.load %arg2[%c0_5, %c0_6] : memref<32x256xbf16, #tpu.memory_space<vmem>>, vector<32x256xbf16>
    %cst = arith.constant dense<0.000000e+00> : vector<8x256xf32>
    %6 = tpu.matmul %4, %5, %cst {dimension_numbers = #tpu.dot_dimension_numbers<[1], [0], [0], [1], [0, 0, 1, 1], [], []>} : vector<8x32xbf16>, vector<32x256xbf16>, vector<8x256xf32> -> vector<8x256xf32>
    %7 = vector.broadcast %0 : vector<1x256xf32> to vector<8x256xf32>
    %8 = arith.addf %6, %7 : vector<8x256xf32>
    %cst_7 = arith.constant 0.000000e+00 : f32
    %9 = vector.broadcast %cst_7 : f32 to vector<8x256xf32>
    %10 = arith.maximumf %8, %9 : vector<8x256xf32>
    %11 = arith.truncf %10 : vector<8x256xf32> to vector<8x256xbf16>
    %c0_8 = arith.constant 0 : index
    %c0_9 = arith.constant 0 : index
    %12 = vector.load %arg3[%c0_8, %c0_9] : memref<256x256xbf16, #tpu.memory_space<vmem>>, vector<256x256xbf16>
    %cst_10 = arith.constant dense<0.000000e+00> : vector<8x256xf32>
    %13 = tpu.matmul %11, %12, %cst_10 {dimension_numbers = #tpu.dot_dimension_numbers<[1], [0], [0], [1], [0, 0, 1, 1], [], []>} : vector<8x256xbf16>, vector<256x256xbf16>, vector<8x256xf32> -> vector<8x256xf32>
    %14 = vector.broadcast %1 : vector<1x256xf32> to vector<8x256xf32>
    %15 = arith.addf %13, %14 : vector<8x256xf32>
    %cst_11 = arith.constant 0.000000e+00 : f32
    %16 = vector.broadcast %cst_11 : f32 to vector<8x256xf32>
    %17 = arith.maximumf %15, %16 : vector<8x256xf32>
    %18 = arith.truncf %17 : vector<8x256xf32> to vector<8x256xbf16>
    %c0_12 = arith.constant 0 : index
    %c0_13 = arith.constant 0 : index
    %19 = vector.load %arg4[%c0_12, %c0_13] : memref<256x128xbf16, #tpu.memory_space<vmem>>, vector<256x128xbf16>
    %cst_14 = arith.constant dense<0.000000e+00> : vector<8x128xf32>
    %20 = tpu.matmul %18, %19, %cst_14 {dimension_numbers = #tpu.dot_dimension_numbers<[1], [0], [0], [1], [0, 0, 1, 1], [], []>} : vector<8x256xbf16>, vector<256x128xbf16>, vector<8x128xf32> -> vector<8x128xf32>
    %21 = vector.broadcast %2 : vector<1x128xf32> to vector<8x128xf32>
    %22 = arith.addf %20, %21 : vector<8x128xf32>
    %23 = tpu.iota {dimensions = array<i32: 1>} : vector<8x128xi32>
    %cst_15 = arith.constant 9.99999997E-7 : f32
    %cst_16 = arith.constant 1.000000e+00 : f32
    %24 = vector.broadcast %cst_15 : f32 to vector<8x128xf32>
    %25 = arith.maximumf %24, %22 : vector<8x128xf32>
    %26 = vector.broadcast %cst_16 : f32 to vector<8x128xf32>
    %27 = arith.minimumf %26, %25 : vector<8x128xf32>
    %c64_i32 = arith.constant 64 : i32
    %28 = vector.broadcast %c64_i32 : i32 to vector<8x128xi32>
    %29 = arith.cmpi sge, %23, %28 : vector<8x128xi32>
    %30 = arith.select %29, %27, %22 : vector<8x128xi1>, vector<8x128xf32>
    %31 = arith.truncf %30 : vector<8x128xf32> to vector<8x128xbf16>
    %c0_17 = arith.constant 0 : index
    %c0_18 = arith.constant 0 : index
    %32 = vector.load %arg6[%c0_17, %c0_18] : memref<8x128xbf16, #tpu.memory_space<vmem>>, vector<8x128xbf16>
    tpu.vector_store %arg6[%c0_17, %c0_18], %31 {strides = array<i32>} : memref<8x128xbf16, #tpu.memory_space<vmem>>, vector<8x128xbf16>,
    return
  }
  func.func @transform_0(%arg0: i32) -> (i32, i32) {
    %c0_i32 = arith.constant 0 : i32
    %c0_i32_0 = arith.constant 0 : i32
    return %arg0, %c0_i32 : i32, i32
  }
  func.func @transform_1(%arg0: i32) -> (i32, i32) {
    %c0_i32 = arith.constant 0 : i32
    %c0_i32_0 = arith.constant 0 : i32
    %c0_i32_1 = arith.constant 0 : i32
    return %c0_i32, %c0_i32_0 : i32, i32
  }
  func.func @transform_2(%arg0: i32) -> (i32, i32) {
    %c0_i32 = arith.constant 0 : i32
    %c0_i32_0 = arith.constant 0 : i32
    %c0_i32_1 = arith.constant 0 : i32
    return %c0_i32, %c0_i32_0 : i32, i32
  }
  func.func @transform_3(%arg0: i32) -> (i32, i32) {
    %c0_i32 = arith.constant 0 : i32
    %c0_i32_0 = arith.constant 0 : i32
    %c0_i32_1 = arith.constant 0 : i32
    return %c0_i32, %c0_i32_0 : i32, i32
  }
  func.func @transform_4(%arg0: i32) -> (i32, i32) {
    %c0_i32 = arith.constant 0 : i32
    %c0_i32_0 = arith.constant 0 : i32
    %c0_i32_1 = arith.constant 0 : i32
    return %c0_i32, %c0_i32_0 : i32, i32
  }
  func.func @transform_5(%arg0: i32) -> (i32, i32) {
    %c0_i32 = arith.constant 0 : i32
    %c0_i32_0 = arith.constant 0 : i32
    return %arg0, %c0_i32 : i32, i32
  }
}

</mosaic_0001>

<llo_original>
// kernel: tpu_custom_call.1
$region0: #{tpu_custom_call.1}
  #allocation0 [shape = 'u32[]', space=smem, size = 0x4, offset = 0x4, fixed_abs, tag = 'smem constant byte address 0x4 - core index']
  #allocation1 [shape = 'u32[72,128]{1,0:T(1,128)}', space=vmem, size = 0x9000, scoped, tag = 'internal scratch']
  %s0 = inlined_call_operand.hbm [shape: f32[8,32], index: 0, kind: input, shape index: {}]
  %s1 = inlined_call_operand.hbm [shape: bf16[32,256], index: 1, kind: input, shape index: {}]
  %s2 = inlined_call_operand.hbm [shape: bf16[256,256], index: 2, kind: input, shape index: {}]
  %s3 = inlined_call_operand.hbm [shape: bf16[256,128], index: 3, kind: input, shape index: {}]
  %s4 = inlined_call_operand.hbm [shape: f32[1,640], index: 4, kind: input, shape index: {}]
  %s5 = inlined_call_operand.hbm [shape: bf16[8,128], index: 5, kind: output, shape index: {}]
  %s6 = sld [smem:[#allocation0]]
  $region50: #{tpu_custom_call.1} parent=0
    _
  %s8 = ssub.s32 1, %s6
  %s9 = scalar_select 0, %s8, %s6
  $region1: #{tpu_custom_call.1} parent=0
    #allocation2 [shape = 'u8[4096]{0}', space=vmem, size = 0x1000, scoped, tag = 'input window, operand 0, single buffered']
    #allocation3 [shape = 's32[1]{0}', space=sflag, size = 0x4, scoped, tag = 'scoped memory for tpu_custom_call.1']
    #allocation4 [shape = 's32[1]{0}', space=sflag, size = 0x4, scoped, tag = 'scoped memory for tpu_custom_call.1']
    #allocation5 [shape = 'u8[16384]{0}', space=vmem, size = 0x4000, scoped, tag = 'input window, operand 1, single buffered']
    #allocation6 [shape = 's32[1]{0}', space=sflag, size = 0x4, scoped, tag = 'scoped memory for tpu_custom_call.1']
    #allocation7 [shape = 'u8[131072]{0}', space=vmem, size = 0x20000, scoped, tag = 'input window, operand 2, single buffered']
    #allocation8 [shape = 'u8[65536]{0}', space=vmem, size = 0x10000, scoped, tag = 'input window, operand 3, single buffered']
    #allocation9 [shape = 's32[1]{0}', space=sflag, size = 0x4, scoped, tag = 'scoped memory for tpu_custom_call.1']
    #allocation10 [shape = 'u8[2560]{0}', space=vmem, size = 0xc00, scoped, tag = 'input window, operand 4, single buffered']
    #allocation11 [shape = 'u8[2048]{0}', space=vmem, size = 0x800, scoped, tag = 'output window, operand 0, single buffered']
    %10 = vsyncpa [#allocation3], 0
    %11 = vsyncpa [#allocation6], 0
    %12 = vsyncpa [#allocation9], 0
    %13 = vsyncpa [#allocation4], 0
    // Predicated region
    $region2: #{tpu_custom_call.1} parent=1 // pred_check
      _
    $region3: #{tpu_custom_call.1} parent=1 // pred_check_branch
      %15 = sbr.rel (0) target = $region5
    $region4: #{tpu_custom_call.1} parent=1 // pred_region
      %17 = vsyncadd [#allocation3], 0
      %s19 = sshll.u32 %s0, 4
      %s20 = int_to_ptr.hbm [resolvable:$true] %s19
      %s21 = sshll.u32 [#allocation2], 4
      %s22 = int_to_ptr.vmem [resolvable:$true] %s21
      %24 = dma.hbm_to_vmem [thread:$0]  %s20, 128, %s22, [#allocation3]
    $region5: #{tpu_custom_call.1} parent=1 // pred_fallthru
      _
    // Predicated region
    $region6: #{tpu_custom_call.1} parent=1 // pred_check
      _
    $region7: #{tpu_custom_call.1} parent=1 // pred_check_branch
      %26 = sbr.rel (0) target = $region9
    $region8: #{tpu_custom_call.1} parent=1 // pred_region
      %28 = vsyncadd [#allocation6], 0
      %s29 = sshll.u32 %s1, 4
      %s30 = int_to_ptr.hbm [resolvable:$true] %s29
      %s31 = sshll.u32 [#allocation5], 4
      %s32 = int_to_ptr.vmem [resolvable:$true] %s31
      %37 = dma.hbm_to_vmem [thread:$0]  %s30, 512, %s32, [#allocation6], 128, 128, 8
    $region9: #{tpu_custom_call.1} parent=1 // pred_fallthru
      _
    // Predicated region
    $region10: #{tpu_custom_call.1} parent=1 // pred_check
      _
    $region11: #{tpu_custom_call.1} parent=1 // pred_check_branch
      %39 = sbr.rel (0) target = $region13
    $region12: #{tpu_custom_call.1} parent=1 // pred_region
      %41 = vsyncadd [#allocation6], 0
      %s42 = sshll.u32 %s2, 4
      %s43 = int_to_ptr.hbm [resolvable:$true] %s42
      %s44 = sshll.u32 [#allocation7], 4
      %s45 = int_to_ptr.vmem [resolvable:$true] %s44
      %50 = dma.hbm_to_vmem [thread:$0]  %s43, 4096, %s45, [#allocation6], 128, 128, 8
    $region13: #{tpu_custom_call.1} parent=1 // pred_fallthru
      _
    // Predicated region
    $region14: #{tpu_custom_call.1} parent=1 // pred_check
      _
    $region15: #{tpu_custom_call.1} parent=1 // pred_check_branch
      %52 = sbr.rel (0) target = $region17
    $region16: #{tpu_custom_call.1} parent=1 // pred_region
      %54 = vsyncadd [#allocation9], 0
      %s55 = sshll.u32 %s3, 4
      %s56 = int_to_ptr.hbm [resolvable:$true] %s55
      %s57 = sshll.u32 [#allocation8], 4
      %s58 = int_to_ptr.vmem [resolvable:$true] %s57
      %63 = dma.hbm_to_vmem [thread:$0]  %s56, 2048, %s58, [#allocation9], 64, 64, 4
    $region17: #{tpu_custom_call.1} parent=1 // pred_fallthru
      _
    // Predicated region
    $region18: #{tpu_custom_call.1} parent=1 // pred_check
      _
    $region19: #{tpu_custom_call.1} parent=1 // pred_check_branch
      %65 = sbr.rel (0) target = $region21
    $region20: #{tpu_custom_call.1} parent=1 // pred_region
      %67 = vsyncadd [#allocation9], 0
      %s69 = sshll.u32 %s4, 4
      %s70 = int_to_ptr.hbm [resolvable:$true] %s69
      %s71 = sshll.u32 [#allocation10], 4
      %s72 = int_to_ptr.vmem [resolvable:$true] %s71
      %74 = dma.hbm_to_vmem [thread:$0]  %s70, 80, %s72, [#allocation9]
    $region21: #{tpu_custom_call.1} parent=1 // pred_fallthru
      _
    // Predicated region
    $region22: #{tpu_custom_call.1} parent=1 // pred_check
      _
    $region23: #{tpu_custom_call.1} parent=1 // pred_check_branch
      %76 = sbr.rel (0) target = $region25
    $region24: #{tpu_custom_call.1} parent=1 // pred_region
      %78 = dma.done [#allocation3], 128
    $region25: #{tpu_custom_call.1} parent=1 // pred_fallthru
      _
    // Predicated region
    $region26: #{tpu_custom_call.1} parent=1 // pred_check
      _
    $region27: #{tpu_custom_call.1} parent=1 // pred_check_branch
      %80 = sbr.rel (0) target = $region29
    $region28: #{tpu_custom_call.1} parent=1 // pred_region
      %82 = dma.done [#allocation6], 512
    $region29: #{tpu_custom_call.1} parent=1 // pred_fallthru
      _
    // Predicated region
    $region30: #{tpu_custom_call.1} parent=1 // pred_check
      _
    $region31: #{tpu_custom_call.1} parent=1 // pred_check_branch
      %84 = sbr.rel (0) target = $region33
    $region32: #{tpu_custom_call.1} parent=1 // pred_region
      %86 = dma.done [#allocation6], 4096
    $region33: #{tpu_custom_call.1} parent=1 // pred_fallthru
      _
    // Predicated region
    $region34: #{tpu_custom_call.1} parent=1 // pred_check
      _
    $region35: #{tpu_custom_call.1} parent=1 // pred_check_branch
      %88 = sbr.rel (0) target = $region37
    $region36: #{tpu_custom_call.1} parent=1 // pred_region
      %90 = dma.done [#allocation9], 2048
    $region37: #{tpu_custom_call.1} parent=1 // pred_fallthru
      _
    // Predicated region
    $region38: #{tpu_custom_call.1} parent=1 // pred_check
      _
    $region39: #{tpu_custom_call.1} parent=1 // pred_check_branch
      %92 = sbr.rel (0) target = $region41
    $region40: #{tpu_custom_call.1} parent=1 // pred_region
      %94 = dma.done [#allocation9], 80
    $region41: #{tpu_custom_call.1} parent=1 // pred_fallthru
      _
    %v96 = vld [vmem:[#allocation10] sm:$0x3]
    %v97 = vld [vmem:[#allocation10 + $0x2] sm:$0x3]
    %v98 = vld [vmem:[#allocation10 + $0x4] sm:$0x1]
    %v99 = vld [vmem:[#allocation2] sm:$0xff]
    %v100 = vpack.c.bf16 %v99, %v99
    %v101 = vld [vmem:[#allocation5] sm:$0xff]
    %v102 = vld [vmem:[#allocation5 + $0x8] sm:$0xff]
    %v103 = vld [vmem:[#allocation5 + $0x10] sm:$0xff]
    %v104 = vld [vmem:[#allocation5 + $0x18] sm:$0xff]
    %v106 = vperm.slane %v96, 0
    %v107 = vperm.slane %v96, 1
    %v114 = vunpack.c.l.b16 %v101
    %v115 = vunpack.c.h.b16 %v101
    %v116 = vunpack.c.l.b16 %v102
    %v117 = vunpack.c.h.b16 %v102
    %v118 = vunpack.c.l.b16 %v103
    %v119 = vunpack.c.h.b16 %v103
    %v120 = vunpack.c.l.b16 %v104
    %v121 = vunpack.c.h.b16 %v104
    %v122 = vpack.c.b16 %v116, %v114
    %v123 = vpack.c.b16 %v117, %v115
    %v124 = vpack.c.b16 %v120, %v118
    %v125 = vpack.c.b16 %v121, %v119
    %vm130 = vcmask 261120
    %v132 = vsel %vm130, %v100, 0
    %134 = vmatpush.bf16.msra.mxu0 0
    %135 = vmatpush.bf16.msra.mxu0 0
    %136 = vmatpush.bf16.msra.mxu0 0
    %137 = vmatpush.bf16.msra.mxu0 0
    %138 = vmatpush.bf16.msra.mxu0 0
    %139 = vmatpush.bf16.msra.mxu0 0
    %140 = vmatpush.bf16.msra.mxu0 %v124
    %141 = vmatpush.bf16.msra.mxu0 %v122
    %142 = vmatmul.bf16.gmra.mxu0 %v132
    %v143 = vpop.f32.mrf.mxu0
    %v144 = vadd.f32 %v106, %v143
    %v145 = vpop.f32.mrf.mxu0
    %146 = vdwg.mxu0
    %147 = vmatpush.bf16.msra.mxu0 0
    %148 = vmatpush.bf16.msra.mxu0 0
    %149 = vmatpush.bf16.msra.mxu0 0
    %150 = vmatpush.bf16.msra.mxu0 0
    %151 = vmatpush.bf16.msra.mxu0 0
    %152 = vmatpush.bf16.msra.mxu0 0
    %153 = vmatpush.bf16.msra.mxu0 %v125
    %154 = vmatpush.bf16.msra.mxu0 %v123
    %155 = vmatmul.bf16.gmra.mxu0 %v132
    %v156 = vpop.f32.mrf.mxu0
    %v157 = vadd.f32 %v107, %v156
    %v158 = vpop.f32.mrf.mxu0
    %159 = vdwg.mxu0
    %v160 = vmax.f32 %v144, 0.0
    %v161 = vmax.f32 %v157, 0.0
    %v162 = vpack.c.bf16 %v160, %v160
    %v163 = vpack.c.bf16 %v161, %v161
    %v164 = vld [vmem:[#allocation7] sm:$0xff]
    %v165 = vld [vmem:[#allocation7 + $0x8] sm:$0xff]
    %v166 = vld [vmem:[#allocation7 + $0x10] sm:$0xff]
    %v167 = vld [vmem:[#allocation7 + $0x18] sm:$0xff]
    %v168 = vld [vmem:[#allocation7 + $0x20] sm:$0xff]
    %v169 = vld [vmem:[#allocation7 + $0x28] sm:$0xff]
    %v170 = vld [vmem:[#allocation7 + $0x30] sm:$0xff]
    %v171 = vld [vmem:[#allocation7 + $0x38] sm:$0xff]
    %v172 = vld [vmem:[#allocation7 + $0x40] sm:$0xff]
    %v173 = vld [vmem:[#allocation7 + $0x48] sm:$0xff]
    %v174 = vld [vmem:[#allocation7 + $0x50] sm:$0xff]
    %v175 = vld [vmem:[#allocation7 + $0x58] sm:$0xff]
    %v176 = vld [vmem:[#allocation7 + $0x60] sm:$0xff]
    %v177 = vld [vmem:[#allocation7 + $0x68] sm:$0xff]
    %v178 = vld [vmem:[#allocation7 + $0x70] sm:$0xff]
    %v179 = vld [vmem:[#allocation7 + $0x78] sm:$0xff]
    %v180 = vld [vmem:[#allocation7 + $0x80] sm:$0xff]
    %v181 = vld [vmem:[#allocation7 + $0x88] sm:$0xff]
    %v182 = vld [vmem:[#allocation7 + $0x90] sm:$0xff]
    %v183 = vld [vmem:[#allocation7 + $0x98] sm:$0xff]
    %v184 = vld [vmem:[#allocation7 + $0xa0] sm:$0xff]
    %v185 = vld [vmem:[#allocation7 + $0xa8] sm:$0xff]
    %v186 = vld [vmem:[#allocation7 + $0xb0] sm:$0xff]
    %v187 = vld [vmem:[#allocation7 + $0xb8] sm:$0xff]
    %v188 = vld [vmem:[#allocation7 + $0xc0] sm:$0xff]
    %v189 = vld [vmem:[#allocation7 + $0xc8] sm:$0xff]
    %v190 = vld [vmem:[#allocation7 + $0xd0] sm:$0xff]
    %v191 = vld [vmem:[#allocation7 + $0xd8] sm:$0xff]
    %v192 = vld [vmem:[#allocation7 + $0xe0] sm:$0xff]
    %v193 = vld [vmem:[#allocation7 + $0xe8] sm:$0xff]
    %v194 = vld [vmem:[#allocation7 + $0xf0] sm:$0xff]
    %v195 = vld [vmem:[#allocation7 + $0xf8] sm:$0xff]
    %v197 = vperm.slane %v97, 0
    %v198 = vperm.slane %v97, 1
    %v233 = vunpack.c.l.b16 %v164
    %v234 = vunpack.c.h.b16 %v164
    %v235 = vunpack.c.l.b16 %v165
    %v236 = vunpack.c.h.b16 %v165
    %v237 = vunpack.c.l.b16 %v166
    %v238 = vunpack.c.h.b16 %v166
    %v239 = vunpack.c.l.b16 %v167
    %v240 = vunpack.c.h.b16 %v167
    %v241 = vunpack.c.l.b16 %v168
    %v242 = vunpack.c.h.b16 %v168
    %v243 = vunpack.c.l.b16 %v169
    %v244 = vunpack.c.h.b16 %v169
    %v245 = vunpack.c.l.b16 %v170
    %v246 = vunpack.c.h.b16 %v170
    %v247 = vunpack.c.l.b16 %v171
    %v248 = vunpack.c.h.b16 %v171
    %v249 = vunpack.c.l.b16 %v172
    %v250 = vunpack.c.h.b16 %v172
    %v251 = vunpack.c.l.b16 %v173
    %v252 = vunpack.c.h.b16 %v173
    %v253 = vunpack.c.l.b16 %v174
    %v254 = vunpack.c.h.b16 %v174
    %v255 = vunpack.c.l.b16 %v175
    %v256 = vunpack.c.h.b16 %v175
    %v257 = vunpack.c.l.b16 %v176
    %v258 = vunpack.c.h.b16 %v176
    %v259 = vunpack.c.l.b16 %v177
    %v260 = vunpack.c.h.b16 %v177
    %v261 = vunpack.c.l.b16 %v178
    %v262 = vunpack.c.h.b16 %v178
    %v263 = vunpack.c.l.b16 %v179
    %v264 = vunpack.c.h.b16 %v179
    %v265 = vunpack.c.l.b16 %v180
    %v266 = vunpack.c.h.b16 %v180
    %v267 = vunpack.c.l.b16 %v181
    %v268 = vunpack.c.h.b16 %v181
    %v269 = vunpack.c.l.b16 %v182
    %v270 = vunpack.c.h.b16 %v182
    %v271 = vunpack.c.l.b16 %v183
    %v272 = vunpack.c.h.b16 %v183
    %v273 = vunpack.c.l.b16 %v184
    %v274 = vunpack.c.h.b16 %v184
    %v275 = vunpack.c.l.b16 %v185
    %v276 = vunpack.c.h.b16 %v185
    %v277 = vunpack.c.l.b16 %v186
    %v278 = vunpack.c.h.b16 %v186
    %v279 = vunpack.c.l.b16 %v187
    %v280 = vunpack.c.h.b16 %v187
    %v281 = vunpack.c.l.b16 %v188
    %v282 = vunpack.c.h.b16 %v188
    %v283 = vunpack.c.l.b16 %v189
    %v284 = vunpack.c.h.b16 %v189
    %v285 = vunpack.c.l.b16 %v190
    %v286 = vunpack.c.h.b16 %v190
    %v287 = vunpack.c.l.b16 %v191
    %v288 = vunpack.c.h.b16 %v191
    %v289 = vunpack.c.l.b16 %v192
    %v290 = vunpack.c.h.b16 %v192
    %v291 = vunpack.c.l.b16 %v193
    %v292 = vunpack.c.h.b16 %v193
    %v293 = vunpack.c.l.b16 %v194
    %v294 = vunpack.c.h.b16 %v194
    %v295 = vunpack.c.l.b16 %v195
    %v296 = vunpack.c.h.b16 %v195
    %v297 = vpack.c.b16 %v235, %v233
    %v298 = vpack.c.b16 %v236, %v234
    %v299 = vpack.c.b16 %v239, %v237
    %v300 = vpack.c.b16 %v240, %v238
    %v301 = vpack.c.b16 %v243, %v241
    %v302 = vpack.c.b16 %v244, %v242
    %v303 = vpack.c.b16 %v247, %v245
    %v304 = vpack.c.b16 %v248, %v246
    %v305 = vpack.c.b16 %v251, %v249
    %v306 = vpack.c.b16 %v252, %v250
    %v307 = vpack.c.b16 %v255, %v253
    %v308 = vpack.c.b16 %v256, %v254
    %v309 = vpack.c.b16 %v259, %v257
    %v310 = vpack.c.b16 %v260, %v258
    %v311 = vpack.c.b16 %v263, %v261
    %v312 = vpack.c.b16 %v264, %v262
    %v313 = vpack.c.b16 %v267, %v265
    %v314 = vpack.c.b16 %v268, %v266
    %v315 = vpack.c.b16 %v271, %v269
    %v316 = vpack.c.b16 %v272, %v270
    %v317 = vpack.c.b16 %v275, %v273
    %v318 = vpack.c.b16 %v276, %v274
    %v319 = vpack.c.b16 %v279, %v277
    %v320 = vpack.c.b16 %v280, %v278
    %v321 = vpack.c.b16 %v283, %v281
    %v322 = vpack.c.b16 %v284, %v282
    %v323 = vpack.c.b16 %v287, %v285
    %v324 = vpack.c.b16 %v288, %v286
    %v325 = vpack.c.b16 %v291, %v289
    %v326 = vpack.c.b16 %v292, %v290
    %v327 = vpack.c.b16 %v295, %v293
    %v328 = vpack.c.b16 %v296, %v294
    %361 = vmatpush.bf16.msra.mxu0 %v311
    %362 = vmatpush.bf16.msra.mxu0 %v309
    %363 = vmatpush.bf16.msra.mxu0 %v307
    %364 = vmatpush.bf16.msra.mxu0 %v305
    %365 = vmatpush.bf16.msra.mxu0 %v303
    %366 = vmatpush.bf16.msra.mxu0 %v301
    %367 = vmatpush.bf16.msra.mxu0 %v299
    %368 = vmatpush.bf16.msra.mxu0 %v297
    %369 = vmatmul.bf16.gmra.mxu0 %v162
    %v370 = vpop.f32.mrf.mxu0
    %v371 = vadd.f32 %v197, %v370
    %v372 = vpop.f32.mrf.mxu0
    %373 = vdwg.mxu0
    %374 = vmatpush.bf16.msra.mxu0 %v327
    %375 = vmatpush.bf16.msra.mxu0 %v325
    %376 = vmatpush.bf16.msra.mxu0 %v323
    %377 = vmatpush.bf16.msra.mxu0 %v321
    %378 = vmatpush.bf16.msra.mxu0 %v319
    %379 = vmatpush.bf16.msra.mxu0 %v317
    %380 = vmatpush.bf16.msra.mxu0 %v315
    %381 = vmatpush.bf16.msra.mxu0 %v313
    %382 = vmatmul.bf16.gmra.mxu0 %v163
    %v383 = vpop.f32.mrf.mxu0
    %v384 = vadd.f32 %v371, %v383
    %v385 = vpop.f32.mrf.mxu0
    %386 = vdwg.mxu0
    %387 = vmatpush.bf16.msra.mxu0 %v312
    %388 = vmatpush.bf16.msra.mxu0 %v310
    %389 = vmatpush.bf16.msra.mxu0 %v308
    %390 = vmatpush.bf16.msra.mxu0 %v306
    %391 = vmatpush.bf16.msra.mxu0 %v304
    %392 = vmatpush.bf16.msra.mxu0 %v302
    %393 = vmatpush.bf16.msra.mxu0 %v300
    %394 = vmatpush.bf16.msra.mxu0 %v298
    %395 = vmatmul.bf16.gmra.mxu0 %v162
    %v396 = vpop.f32.mrf.mxu0
    %v397 = vadd.f32 %v198, %v396
    %v398 = vpop.f32.mrf.mxu0
    %399 = vdwg.mxu0
    %400 = vmatpush.bf16.msra.mxu0 %v328
    %401 = vmatpush.bf16.msra.mxu0 %v326
    %402 = vmatpush.bf16.msra.mxu0 %v324
    %403 = vmatpush.bf16.msra.mxu0 %v322
    %404 = vmatpush.bf16.msra.mxu0 %v320
    %405 = vmatpush.bf16.msra.mxu0 %v318
    %406 = vmatpush.bf16.msra.mxu0 %v316
    %407 = vmatpush.bf16.msra.mxu0 %v314
    %408 = vmatmul.bf16.gmra.mxu0 %v163
    %v409 = vpop.f32.mrf.mxu0
    %v410 = vadd.f32 %v397, %v409
    %v411 = vpop.f32.mrf.mxu0
    %412 = vdwg.mxu0
    %v413 = vmax.f32 %v384, 0.0
    %v414 = vmax.f32 %v410, 0.0
    %v415 = vpack.c.bf16 %v413, %v413
    %v416 = vpack.c.bf16 %v414, %v414
    %v417 = vld [vmem:[#allocation8] sm:$0xf]
    %v418 = vld [vmem:[#allocation8 + $0x4] sm:$0xf]
    %v419 = vld [vmem:[#allocation8 + $0x8] sm:$0xf]
    %v420 = vld [vmem:[#allocation8 + $0xc] sm:$0xf]
    %v421 = vld [vmem:[#allocation8 + $0x10] sm:$0xf]
    %v422 = vld [vmem:[#allocation8 + $0x14] sm:$0xf]
    %v423 = vld [vmem:[#allocation8 + $0x18] sm:$0xf]
    %v424 = vld [vmem:[#allocation8 + $0x1c] sm:$0xf]
    %v425 = vld [vmem:[#allocation8 + $0x20] sm:$0xf]
    %v426 = vld [vmem:[#allocation8 + $0x24] sm:$0xf]
    %v427 = vld [vmem:[#allocation8 + $0x28] sm:$0xf]
    %v428 = vld [vmem:[#allocation8 + $0x2c] sm:$0xf]
    %v429 = vld [vmem:[#allocation8 + $0x30] sm:$0xf]
    %v430 = vld [vmem:[#allocation8 + $0x34] sm:$0xf]
    %v431 = vld [vmem:[#allocation8 + $0x38] sm:$0xf]
    %v432 = vld [vmem:[#allocation8 + $0x3c] sm:$0xf]
    %v433 = vld [vmem:[#allocation8 + $0x40] sm:$0xf]
    %v434 = vld [vmem:[#allocation8 + $0x44] sm:$0xf]
    %v435 = vld [vmem:[#allocation8 + $0x48] sm:$0xf]
    %v436 = vld [vmem:[#allocation8 + $0x4c] sm:$0xf]
    %v437 = vld [vmem:[#allocation8 + $0x50] sm:$0xf]
    %v438 = vld [vmem:[#allocation8 + $0x54] sm:$0xf]
    %v439 = vld [vmem:[#allocation8 + $0x58] sm:$0xf]
    %v440 = vld [vmem:[#allocation8 + $0x5c] sm:$0xf]
    %v441 = vld [vmem:[#allocation8 + $0x60] sm:$0xf]
    %v442 = vld [vmem:[#allocation8 + $0x64] sm:$0xf]
    %v443 = vld [vmem:[#allocation8 + $0x68] sm:$0xf]
    %v444 = vld [vmem:[#allocation8 + $0x6c] sm:$0xf]
    %v445 = vld [vmem:[#allocation8 + $0x70] sm:$0xf]
    %v446 = vld [vmem:[#allocation8 + $0x74] sm:$0xf]
    %v447 = vld [vmem:[#allocation8 + $0x78] sm:$0xf]
    %v448 = vld [vmem:[#allocation8 + $0x7c] sm:$0xf]
    %v450 = vperm.slane %v98, 0
    %v484 = vunpack.c.l.b16 %v417
    %v485 = vunpack.c.l.b16 %v418
    %v486 = vunpack.c.l.b16 %v419
    %v487 = vunpack.c.l.b16 %v420
    %v488 = vunpack.c.l.b16 %v421
    %v489 = vunpack.c.l.b16 %v422
    %v490 = vunpack.c.l.b16 %v423
    %v491 = vunpack.c.l.b16 %v424
    %v492 = vunpack.c.l.b16 %v425
    %v493 = vunpack.c.l.b16 %v426
    %v494 = vunpack.c.l.b16 %v427
    %v495 = vunpack.c.l.b16 %v428
    %v496 = vunpack.c.l.b16 %v429
    %v497 = vunpack.c.l.b16 %v430
    %v498 = vunpack.c.l.b16 %v431
    %v499 = vunpack.c.l.b16 %v432
    %v500 = vunpack.c.l.b16 %v433
    %v501 = vunpack.c.l.b16 %v434
    %v502 = vunpack.c.l.b16 %v435
    %v503 = vunpack.c.l.b16 %v436
    %v504 = vunpack.c.l.b16 %v437
    %v505 = vunpack.c.l.b16 %v438
    %v506 = vunpack.c.l.b16 %v439
    %v507 = vunpack.c.l.b16 %v440
    %v508 = vunpack.c.l.b16 %v441
    %v509 = vunpack.c.l.b16 %v442
    %v510 = vunpack.c.l.b16 %v443
    %v511 = vunpack.c.l.b16 %v444
    %v512 = vunpack.c.l.b16 %v445
    %v513 = vunpack.c.l.b16 %v446
    %v514 = vunpack.c.l.b16 %v447
    %v515 = vunpack.c.l.b16 %v448
    %v516 = vpack.c.b16 %v485, %v484
    %v517 = vpack.c.b16 %v487, %v486
    %v518 = vpack.c.b16 %v489, %v488
    %v519 = vpack.c.b16 %v491, %v490
    %v520 = vpack.c.b16 %v493, %v492
    %v521 = vpack.c.b16 %v495, %v494
    %v522 = vpack.c.b16 %v497, %v496
    %v523 = vpack.c.b16 %v499, %v498
    %v524 = vpack.c.b16 %v501, %v500
    %v525 = vpack.c.b16 %v503, %v502
    %v526 = vpack.c.b16 %v505, %v504
    %v527 = vpack.c.b16 %v507, %v506
    %v528 = vpack.c.b16 %v509, %v508
    %v529 = vpack.c.b16 %v511, %v510
    %v530 = vpack.c.b16 %v513, %v512
    %v531 = vpack.c.b16 %v515, %v514
    %548 = vmatpush.bf16.msra.mxu0 %v523
    %549 = vmatpush.bf16.msra.mxu0 %v522
    %550 = vmatpush.bf16.msra.mxu0 %v521
    %551 = vmatpush.bf16.msra.mxu0 %v520
    %552 = vmatpush.bf16.msra.mxu0 %v519
    %553 = vmatpush.bf16.msra.mxu0 %v518
    %554 = vmatpush.bf16.msra.mxu0 %v517
    %555 = vmatpush.bf16.msra.mxu0 %v516
    %556 = vmatmul.bf16.gmra.mxu0 %v415
    %v557 = vpop.f32.mrf.mxu0
    %v558 = vadd.f32 %v450, %v557
    %v559 = vpop.f32.mrf.mxu0
    %560 = vdwg.mxu0
    %561 = vmatpush.bf16.msra.mxu0 %v531
    %562 = vmatpush.bf16.msra.mxu0 %v530
    %563 = vmatpush.bf16.msra.mxu0 %v529
    %564 = vmatpush.bf16.msra.mxu0 %v528
    %565 = vmatpush.bf16.msra.mxu0 %v527
    %566 = vmatpush.bf16.msra.mxu0 %v526
    %567 = vmatpush.bf16.msra.mxu0 %v525
    %568 = vmatpush.bf16.msra.mxu0 %v524
    %569 = vmatmul.bf16.gmra.mxu0 %v416
    %v570 = vpop.f32.mrf.mxu0
    %v571 = vadd.f32 %v558, %v570
    %v572 = vpop.f32.mrf.mxu0
    %573 = vdwg.mxu0
    %v574 = vlaneseq
    %v575 = vand.u32 %v574, 127
    %v576 = vmax.f32 %v571, 1e-06
    %v577 = vmin.f32 %v576, 1.0
    %vm578 = vcmp.ge.s32.totalorder %v575, 64
    %v579 = vsel %vm578, %v577, %v571
    %v580 = vpack.c.bf16 %v579, %v579
    %581 = vst [vmem:[#allocation11] sm:$0xf] %v580
    // Predicated region
    $region42: #{tpu_custom_call.1} parent=1 // pred_check
      _
    $region43: #{tpu_custom_call.1} parent=1 // pred_check_branch
      %583 = sbr.rel (0) target = $region45
    $region44: #{tpu_custom_call.1} parent=1 // pred_region
      %585 = vsyncadd [#allocation4], 0
      %s587 = sshll.u32 [#allocation11], 4
      %s588 = int_to_ptr.vmem [resolvable:$true] %s587
      %s589 = sshll.u32 %s5, 4
      %s590 = int_to_ptr.hbm [resolvable:$true] %s589
      %592 = dma.vmem_to_hbm [thread:$0]  %s588, 64, %s590, [#allocation4]
    $region45: #{tpu_custom_call.1} parent=1 // pred_fallthru
      _
    // Predicated region
    $region46: #{tpu_custom_call.1} parent=1 // pred_check
      _
    $region47: #{tpu_custom_call.1} parent=1 // pred_check_branch
      %594 = sbr.rel (0) target = $region49
    $region48: #{tpu_custom_call.1} parent=1 // pred_region
      %596 = dma.done [#allocation4], 64
    $region49: #{tpu_custom_call.1} parent=1 // pred_fallthru
      _
    %597 = vsyncpa [#allocation3], 1
    %598 = vsyncpa [#allocation6], 1
    %599 = vsyncpa [#allocation9], 1
    %600 = vsyncpa [#allocation4], 1

</llo_original>
